<compile_context>
chip_gen: v7x
topology: tpu7x:2x2x1
jax: 0.10.0
libtpu: 0.0.40
codegen_flags: <defaults>
</compile_context>

<pallas_src>
import functools

import jax
import jax.numpy as jnp
from jax.experimental import pallas as pl
from jax.experimental.pallas import tpu as pltpu


def _reghead_kernel(x_ref, w_ref, o_ref, acc_ref, *, hw_total, thw, n_hw):
    # x_ref:   (1, C, thw)    one HW tile of one batch element (NCHW layout)
    # w_ref:   (Pp, C)        fused 1x1-conv weights for all tasks (PyTorch (out,in))
    # o_ref:   (1, 1, Pp, 1)  per-(split, batch) spatial max; resident across HW axis
    # acc_ref: (Pp, 128)      lane-dense running max (VMEM scratch)
    c = pl.program_id(0)
    h = pl.program_id(2)
    n_h_half = pl.num_programs(2)
    pp = w_ref.shape[0]

    y = jnp.dot(w_ref[...], x_ref[0],
                preferred_element_type=jnp.float32)            # (Pp, thw), lane-dense

    if hw_total % thw != 0:
        # Ragged last tile (possibly duplicated by the odd 2-way split): mask the
        # lanes past HW with -inf before the max.  Out-of-range block contents are
        # unspecified, and each output column depends only on its own input column,
        # so masking y is sufficient.
        tile_idx = jnp.minimum(c * n_h_half + h, n_hw - 1)
        base = tile_idx * thw
        lane = jax.lax.broadcasted_iota(jnp.int32, (pp, thw), 1)
        y = jnp.where(base + lane < hw_total, y, -jnp.inf)

    if thw % 128 == 0:
        # 128-wide partial reduce + pure-VPU fold into the lane-dense accumulator.
        part = jnp.max(y.reshape(pp, thw // 128, 128), axis=1)  # (Pp, 128)

        @pl.when(h == 0)
        def _():
            acc_ref[...] = part

        @pl.when(h != 0)
        def _():
            acc_ref[...] = jnp.maximum(acc_ref[...], part)

        @pl.when(h == n_h_half - 1)
        def _():
            # One cross-lane reduce + one tiny store per (split, batch) only.
            o_ref[0, 0] = jnp.max(acc_ref[...], axis=-1, keepdims=True)
    else:
        # Single full-extent tile (thw == HW, grid extent along h is 1): reduce
        # directly, no accumulation needed.
        o_ref[0, 0] = jnp.max(y, axis=-1, keepdims=True)


@functools.partial(jax.jit, static_argnames=("num_pred", "max_tile_bytes"))
def reghead_forward(x_nchw, w_all, b_all, *, num_pred=2, max_tile_bytes=None):
    """Fused RegHead forward.

    x_nchw: (B, C, H, W) f32/bf16 (PyTorch layout, consumed directly).
    w_all:  (Pp, C) fused 1x1-conv weights, Pp = roundup(num_tasks*num_pred, 8),
            rows beyond num_tasks*num_pred are zero padding.
    b_all:  (num_tasks*num_pred,) fused biases.
    Returns a list of num_tasks arrays of shape (B, 1, 1, num_pred).
    """
    B, C, H, W = x_nchw.shape
    HW = H * W
    Pp, Cw = w_all.shape
    assert Cw == C
    Pt = b_all.shape[0]
    num_tasks = Pt // num_pred
    itemsize = jnp.dtype(x_nchw.dtype).itemsize

    x = x_nchw.reshape(B, C, HW)              # free reshape, no transpose
    w = w_all.astype(x.dtype)                 # MXU still accumulates in f32

    # ---- Generation-aware tile budget & scoped-VMEM limit ----
    try:
        vmem_cap = int(pltpu.get_tpu_info().vmem_capacity_bytes)
    except Exception:                         # pragma: no cover - conservative default
        vmem_cap = 64 << 20                   # v7x per-TensorCore VMEM
    w_bytes = Pp * C * itemsize
    if max_tile_bytes is None:
        budget = (int(vmem_cap * 0.72) - 2 * w_bytes - (2 << 20)) // 2
        budget = max(min(budget, 32 << 20), 4 << 20)
    else:
        budget = int(max_tile_bytes)

    row_bytes = C * itemsize
    if HW * row_bytes <= budget:
        thw = HW                              # single fully contiguous tile per batch
    else:
        thw = max(128, (budget // row_bytes) // 128 * 128)
        if 512 * row_bytes <= 2 * budget:     # keep DMA rows >= 2 KiB when affordable
            thw = max(thw, 512)
        if thw >= HW:
            thw = HW
    n_hw = -(-HW // thw)                      # ceil-div number of HW tiles
    n_split = 2 if n_hw >= 2 else 1           # feed both v7x TensorCores at small B
    n_h_half = -(-n_hw // n_split)

    tile_bytes = C * thw * itemsize
    y_bytes = Pp * thw * 4                    # f32 matmul result / masked copy
    vmem_limit = 2 * tile_bytes + 2 * w_bytes + 4 * y_bytes + (4 << 20)
    vmem_limit = int(min(max(vmem_limit, 32 << 20), int(vmem_cap * 0.9)))

    kernel = functools.partial(_reghead_kernel, hw_total=HW, thw=thw, n_hw=n_hw)

    out = pl.pallas_call(
        kernel,
        out_shape=jax.ShapeDtypeStruct((n_split, B, Pp, 1), jnp.float32),
        grid_spec=pltpu.PrefetchScalarGridSpec(
            num_scalar_prefetch=0,
            grid=(n_split, B, n_h_half),
            in_specs=[
                pl.BlockSpec(
                    (1, C, thw),
                    lambda c, b, h: (b, 0,
                                     jnp.minimum(c * n_h_half + h, n_hw - 1))),
                pl.BlockSpec((Pp, C), lambda c, b, h: (0, 0)),
            ],
            out_specs=pl.BlockSpec((1, 1, Pp, 1), lambda c, b, h: (c, b, 0, 0)),
            scratch_shapes=[pltpu.VMEM((Pp, 128), jnp.float32)],
        ),
        compiler_params=pltpu.CompilerParams(
            dimension_semantics=("parallel", "parallel", "arbitrary"),
            vmem_limit_bytes=vmem_limit),
    )(x, w)

    out = jnp.max(out, axis=0)                # fold the 2-way TensorCore split
    out = out[:, :Pt, 0] + b_all[None, :]     # bias commutes with the spatial max
    # Per task: (B, 1, 1, P) == permute(0, 2, 3, 1) of the PyTorch (B, P, 1, 1).
    return [out[:, t * num_pred:(t + 1) * num_pred].reshape(B, 1, 1, num_pred)
            for t in range(num_tasks)]


class RegHeadPallas:
    """JAX/Pallas re-implementation of RegHead.forward (inference hot path).

    Holds one Conv2d(in_channels, 2, kernel_size=1) per task; all task convolutions
    are fused into a single (Pp, C) matrix (zero-padded to a multiple of 8 output
    rows) so the input is streamed from HBM exactly once for every task.
    """

    def __init__(self, in_channels, num_tasks, key):
        self.in_channels = in_channels
        self.num_tasks = num_tasks
        self.num_pred = 2  # the module hard-codes num_preds.append(2) per task
        self.params = []   # per-task (w: (2, C), b: (2,)) in PyTorch (out, in) order
        for _ in range(num_tasks):
            key, kw, kb = jax.random.split(key, 3)
            w = (jax.random.normal(kw, (self.num_pred, in_channels), jnp.float32)
                 * (1.0 / jnp.sqrt(jnp.float32(in_channels))))
            b = jax.random.normal(kb, (self.num_pred,), jnp.float32) * 0.01
            self.params.append((w, b))
        pt = num_tasks * self.num_pred
        pp = -(-pt // 8) * 8                      # pad to full 8-sublane vregs
        w_cat = jnp.concatenate([w for (w, _) in self.params], axis=0)      # (Pt, C)
        pad = jnp.zeros((pp - pt, in_channels), jnp.float32)
        self.w_all = jnp.concatenate([w_cat, pad], axis=0)                  # (Pp, C)
        self.b_all = jnp.concatenate([b for (_, b) in self.params], axis=0)  # (Pt,)

    def __call__(self, x_nchw, max_tile_bytes=None):
        return reghead_forward(x_nchw, self.w_all, self.b_all,
                               num_pred=self.num_pred,
                               max_tile_bytes=max_tile_bytes)


def _reference(x_nchw, params):
    """Plain-JAX reference of the PyTorch forward (per-task, unfused)."""
    B = x_nchw.shape[0]
    outs = []
    for (w, b) in params:  # w: (P, C), b: (P,)
        y = jnp.einsum("bchw,pc->bphw", x_nchw, w) + b[None, :, None, None]
        y = jnp.max(y, axis=(2, 3))                           # global max pool -> (B, P)
        outs.append(y.reshape(B, 1, 1, -1))
    return outs


def _check(outs, refs, B, atol, rtol, tag):
    for o, r in zip(outs, refs):
        assert o.shape == (B, 1, 1, 2), (tag, o.shape)
        assert jnp.allclose(o, r, atol=atol, rtol=rtol), f"mismatch vs reference ({tag})"


if __name__ == "__main__":
    key = jax.random.PRNGKey(0)
    k_x, k_p = jax.random.split(key)

    # Module-consistent small shapes: in_channels = sum([128]) = 128, two tasks.
    C, NUM_TASKS = 128, 2
    head = RegHeadPallas(in_channels=C, num_tasks=NUM_TASKS, key=k_p)

    # Case A: single full-extent tile (default generation-aware budget).
    B, H, W = 2, 16, 16
    x = jax.random.normal(k_x, (B, C, H, W), jnp.float32)
    outs = [jax.block_until_ready(o) for o in head(x)]
    _check(outs, _reference(x, head.params), B, 1e-4, 1e-4, "single-tile")

    # Case A-bf16: halve HBM traffic; MXU still accumulates in f32.
    outs_bf16 = [jax.block_until_ready(o) for o in head(x.astype(jnp.bfloat16))]
    _check(outs_bf16, _reference(x, head.params), B, 1e-1, 1e-1, "bf16")

    # Case B: forced multi-tile with a ragged last tile (mask + 2-way split path).
    B, H, W = 2, 20, 40                                   # HW = 800 -> thw 512, 2 tiles
    x = jax.random.normal(jax.random.PRNGKey(1), (B, C, H, W), jnp.float32)
    outs = [jax.block_until_ready(o) for o in head(x, max_tile_bytes=512 * C * 4)]
    _check(outs, _reference(x, head.params), B, 1e-4, 1e-4, "ragged-tiled")

    # Case C: odd tile count -> clamped duplicate tile on the second split half.
    B, H, W = 1, 20, 80                                   # HW = 1600 -> thw 640, 3 tiles
    x = jax.random.normal(jax.random.PRNGKey(2), (B, C, H, W), jnp.float32)
    outs = [jax.block_until_ready(o) for o in head(x, max_tile_bytes=640 * C * 4)]
    _check(outs, _reference(x, head.params), B, 1e-4, 1e-4, "odd-split")

    # Case D: single tile whose HW is not a multiple of 128 (direct-reduce path).
    B, H, W = 2, 10, 10
    x = jax.random.normal(jax.random.PRNGKey(3), (B, C, H, W), jnp.float32)
    outs = [jax.block_until_ready(o) for o in head(x)]
    _check(outs, _reference(x, head.params), B, 1e-4, 1e-4, "non-aligned-hw")

    print("KERNEL_OK")
</pallas_src>

<mosaic_0001>
module attributes {stable_mosaic.version = 11 : i64} {
  func.func @_reghead_kernel(%arg0: i32, %arg1: i32, %arg2: i32, %arg3: memref<1x128x256xf32, #tpu.memory_space<vmem>>, %arg4: memref<8x128xf32, #tpu.memory_space<vmem>>, %arg5: memref<1x1x8x1xf32, #tpu.memory_space<vmem>>, %arg6: memref<8x128xf32, #tpu.memory_space<vmem>>) attributes {dimension_semantics = [#tpu.dimension_semantics<parallel>, #tpu.dimension_semantics<parallel>, #tpu.dimension_semantics<arbitrary>], iteration_bounds = array<i64: 1, 2, 1>, scalar_prefetch = 0 : i64, scratch_operands = 1 : i64, tpu.core_type = #tpu.core_type<tc>, window_params = [{transform_indices = @transform_0, window_bounds = array<i64: 1, 128, 256>}, {pipeline_mode = #tpu.pipeline_mode<synchronous>, transform_indices = @transform_1, window_bounds = array<i64: 8, 128>}, {transform_indices = @transform_2, window_bounds = array<i64: 1, 1, 8, 1>}]} {
    %c0 = arith.constant 0 : index
    %c0_0 = arith.constant 0 : index
    %0 = vector.load %arg4[%c0, %c0_0] : memref<8x128xf32, #tpu.memory_space<vmem>>, vector<8x128xf32>
    %c0_1 = arith.constant 0 : index
    %c0_2 = arith.constant 0 : index
    %c0_3 = arith.constant 0 : index
    %1 = vector.load %arg3[%c0_1, %c0_2, %c0_3] : memref<1x128x256xf32, #tpu.memory_space<vmem>>, vector<1x128x256xf32>
    %2 = vector.shape_cast %1 : vector<1x128x256xf32> to vector<128x256xf32>
    %cst = arith.constant dense<0.000000e+00> : vector<8x256xf32>
    %3 = tpu.matmul %0, %2, %cst {dimension_numbers = #tpu.dot_dimension_numbers<[1], [0], [0], [1], [0, 0, 1, 1], [], []>} : vector<8x128xf32>, vector<128x256xf32>, vector<8x256xf32> -> vector<8x256xf32>
    %4 = vector.shape_cast %3 : vector<8x256xf32> to vector<8x2x128xf32>
    %cst_4 = arith.constant dense<0xFF800000> : vector<8x128xf32>
    %5 = vector.multi_reduction <maximumf>, %4, %cst_4 [1] : vector<8x2x128xf32> to vector<8x128xf32>
    %c0_i32 = arith.constant 0 : i32
    %6 = arith.cmpi eq, %arg2, %c0_i32 : i32
    %7 = arith.extui %6 : i1 to i32
    %c0_i32_5 = arith.constant 0 : i32
    %8 = arith.cmpi ne, %7, %c0_i32_5 : i32
    scf.if %8 {
      %c0_10 = arith.constant 0 : index
      %c0_11 = arith.constant 0 : index
      %15 = vector.load %arg6[%c0_10, %c0_11] : memref<8x128xf32, #tpu.memory_space<vmem>>, vector<8x128xf32>
      tpu.vector_store %arg6[%c0_10, %c0_11], %5 {strides = array<i32>} : memref<8x128xf32, #tpu.memory_space<vmem>>, vector<8x128xf32>,
    } else {
    }
    %c0_i32_6 = arith.constant 0 : i32
    %9 = arith.cmpi ne, %arg2, %c0_i32_6 : i32
    %10 = arith.extui %9 : i1 to i32
    %c0_i32_7 = arith.constant 0 : i32
    %11 = arith.cmpi ne, %10, %c0_i32_7 : i32
    scf.if %11 {
      %c0_10 = arith.constant 0 : index
      %c0_11 = arith.constant 0 : index
      %15 = vector.load %arg6[%c0_10, %c0_11] : memref<8x128xf32, #tpu.memory_space<vmem>>, vector<8x128xf32>
      %16 = arith.maximumf %15, %5 : vector<8x128xf32>
      %c0_12 = arith.constant 0 : index
      %c0_13 = arith.constant 0 : index
      %17 = vector.load %arg6[%c0_12, %c0_13] : memref<8x128xf32, #tpu.memory_space<vmem>>, vector<8x128xf32>
      tpu.vector_store %arg6[%c0_12, %c0_13], %16 {strides = array<i32>} : memref<8x128xf32, #tpu.memory_space<vmem>>, vector<8x128xf32>,
    } else {
    }
    %c0_i32_8 = arith.constant 0 : i32
    %12 = arith.cmpi eq, %arg2, %c0_i32_8 : i32
    %13 = arith.extui %12 : i1 to i32
    %c0_i32_9 = arith.constant 0 : i32
    %14 = arith.cmpi ne, %13, %c0_i32_9 : i32
    scf.if %14 {
      %c0_10 = arith.constant 0 : index
      %c0_11 = arith.constant 0 : index
      %15 = vector.load %arg6[%c0_10, %c0_11] : memref<8x128xf32, #tpu.memory_space<vmem>>, vector<8x128xf32>
      %cst_12 = arith.constant dense<0xFF800000> : vector<8xf32>
      %16 = vector.multi_reduction <maximumf>, %15, %cst_12 [1] : vector<8x128xf32> to vector<8xf32>
      %17 = vector.shape_cast %16 : vector<8xf32> to vector<8x1xf32>
      %c0_13 = arith.constant 0 : index
      %c0_14 = arith.constant 0 : index
      %c0_15 = arith.constant 0 : index
      %c0_16 = arith.constant 0 : index
      %18 = vector.load %arg5[%c0_13, %c0_14, %c0_15, %c0_16] : memref<1x1x8x1xf32, #tpu.memory_space<vmem>>, vector<1x1x8x1xf32>
      %19 = vector.shape_cast %18 : vector<1x1x8x1xf32> to vector<8x1xf32>
      %20 = vector.shape_cast %17 : vector<8x1xf32> to vector<1x1x8x1xf32>
      tpu.vector_store %arg5[%c0_13, %c0_14, %c0_15, %c0_16], %20 {strides = array<i32>} : memref<1x1x8x1xf32, #tpu.memory_space<vmem>>, vector<1x1x8x1xf32>,
    } else {
    }
    return
  }
  func.func @transform_0(%arg0: i32, %arg1: i32, %arg2: i32) -> (i32, i32, i32) {
    %c1_i32 = arith.constant 1 : i32
    %0 = arith.muli %arg0, %c1_i32 : i32
    %1 = arith.addi %0, %arg2 : i32
    %c0_i32 = arith.constant 0 : i32
    %2 = arith.minsi %1, %c0_i32 : i32
    %c0_i32_0 = arith.constant 0 : i32
    %c0_i32_1 = arith.constant 0 : i32
    return %arg1, %c0_i32_0, %2 : i32, i32, i32
  }
  func.func @transform_1(%arg0: i32, %arg1: i32, %arg2: i32) -> (i32, i32) {
    %c0_i32 = arith.constant 0 : i32
    %c0_i32_0 = arith.constant 0 : i32
    %c0_i32_1 = arith.constant 0 : i32
    return %c0_i32, %c0_i32_0 : i32, i32
  }
  func.func @transform_2(%arg0: i32, %arg1: i32, %arg2: i32) -> (i32, i32, i32, i32) {
    %c0_i32 = arith.constant 0 : i32
    %c0_i32_0 = arith.constant 0 : i32
    %c0_i32_1 = arith.constant 0 : i32
    return %arg0, %arg1, %c0_i32, %c0_i32_0 : i32, i32, i32, i32
  }
}

</mosaic_0001>

<llo_original>
// kernel: reghead_forward.1
$region0: #{reghead_forward.1}
  #allocation0 [shape = 'u32[]', space=smem, size = 0x4, offset = 0x4, fixed_abs, tag = 'smem constant byte address 0x4 - core index']
  #allocation1 [shape = 'u32[144,128]{1,0:T(1,128)}', space=vmem, size = 0x12000, scoped, tag = 'internal scratch']
  #allocation2 [shape = 'f32[8,128]{1,0:T(8,128)}', space=vmem, size = 0x1000, scoped, tag = 'scratch operand']
  %s0 = inlined_call_operand.vmem [shape: f32[2,128,256], index: 0, kind: input, shape index: {}]
  %s1 = inlined_call_operand.vmem [shape: f32[8,128], index: 1, kind: input, shape index: {}]
  %s2 = inlined_call_operand.vmem [shape: f32[1,2,8,1], index: 2, kind: output, shape index: {}]
  %s3 = sld [smem:[#allocation0]]
  $region53: #{reghead_forward.1} parent=0
    _
  %s5 = ssub.s32 1, %s3
  %s6 = scalar_select 0, %s5, %s3
  loop: start=0, step=1, limit=4
  $region2: #{reghead_forward.1} parent=0 // loop_pre_header
    _
  $region3: #{reghead_forward.1} parent=0 // loop_header
    %s8 = sphi 0, %s12
    %p9 = scmp.ge.s32.totalorder %s8, 4
    %s15 = sphi 0, %s34
    %s16 = sphi 0, %s30
    %s17 = sphi 0, %s26
    %s18 = sphi 0, %s15
    %s19 = sphi 0, %s16
    %s20 = sphi 0, %s17
    %s21 = sphi 0, %s18
    %s22 = sphi 0, %s19
    %s23 = sphi 0, %s20
    %s45 = sphi 0, %s47
    %s48 = sphi 0, %s45
    %s49 = sphi 0, %s48
    %s65 = sphi 0, %s49
    %s69 = sphi 0, %s69
    %s71 = sphi 0, %s69
    %s72 = sphi 0, %s71
    %s86 = sphi 0, %s72
    %s94 = sphi 0, %s96
    %s97 = sphi 0, %s94
    %s98 = sphi 0, %s97
    %s114 = sphi 0, %s98
  $region4: #{reghead_forward.1} parent=0 // loop_header_branch
    %11 = sbr.rel (%p9) target = $region8
  $region5: #{reghead_forward.1} parent=0 // loop_body
    %s13 = ssub.s32 %s8, 1
    %s14 = ssub.s32 %s8, 2
    %s24 = sadd.s32 1, %s17
    %p25 = scmp.ge.s32.totalorder %s24, 1
    %s26 = scalar_select %p25, 0, %s24
    %s27 = sadd.s32 1, %s16
    %s28 = scalar_select %p25, %s27, %s16
    %p29 = scmp.ge.s32.totalorder %s28, 2
    %s30 = scalar_select %p29, 0, %s28
    %s31 = sadd.s32 1, %s15
    %s32 = scalar_select %p29, %s31, %s15
    %p33 = scmp.ge.s32.totalorder %s32, 1
    %s34 = scalar_select %p33, 0, %s32
    %s35 = sadd.s32 %s15, %s17
    %p36 = scmp.lt.s32.totalorder %s35, 0
    %s37 = scalar_select %p36, %s35, 0
    %s38 = sadd.s32 %s34, %s26
    %p39 = scmp.lt.s32.totalorder %s38, 0
    %s40 = scalar_select %p39, %s38, 0
    %s41 = ssub.s32 %s16, %s30
    %s42 = ssub.s32 %s37, %s40
    %s43 = sor.u32 %s41, %s42
    %p44 = scmp.eq.s32.totalorder %s43, 0
    %s46 = sadd.s32 %s45, 1
    %s47 = scalar_select %p44, %s45, %s46
    %p50 = pneg %p44
    %p51 = scmp.eq.s32.totalorder %s8, 1
    %p52 = por %p50, %p51
    %p53 = scmp.ne.s32.totalorder %s45, %s48
    %p54 = scmp.eq.s32.totalorder %s8, 0
    %p55 = por %p53, %p54
    %p56 = scmp.ne.s32.totalorder %s45, %s48
    %p57 = scmp.eq.s32.totalorder %s13, 1
    %p58 = por %p56, %p57
    %p59 = scmp.ne.s32.totalorder %s48, %s49
    %p60 = scmp.eq.s32.totalorder %s13, 0
    %p61 = por %p59, %p60
    %p62 = scmp.ne.s32.totalorder %s48, %s49
    %p63 = scmp.eq.s32.totalorder %s14, 1
    %p64 = por %p62, %p63
    %p66 = scmp.ne.s32.totalorder %s49, %s65
    %p67 = scmp.eq.s32.totalorder %s14, 0
    %p68 = por %p66, %p67
    %s70 = sadd.s32 %s69, 1
    %p73 = scmp.eq.s32.totalorder %s8, 1
    %p74 = scmp.ne.s32.totalorder %s69, %s71
    %p75 = scmp.eq.s32.totalorder %s8, 0
    %p76 = por %p74, %p75
    %p77 = scmp.ne.s32.totalorder %s69, %s71
    %p78 = scmp.eq.s32.totalorder %s13, 1
    %p79 = por %p77, %p78
    %p80 = scmp.ne.s32.totalorder %s71, %s72
    %p81 = scmp.eq.s32.totalorder %s13, 0
    %p82 = por %p80, %p81
    %p83 = scmp.ne.s32.totalorder %s71, %s72
    %p84 = scmp.eq.s32.totalorder %s14, 1
    %p85 = por %p83, %p84
    %p87 = scmp.ne.s32.totalorder %s72, %s86
    %p88 = scmp.eq.s32.totalorder %s14, 0
    %p89 = por %p87, %p88
    %s90 = ssub.s32 %s15, %s34
    %s91 = ssub.s32 %s16, %s30
    %s92 = sor.u32 %s90, %s91
    %p93 = scmp.eq.s32.totalorder %s92, 0
    %s95 = sadd.s32 %s94, 1
    %s96 = scalar_select %p93, %s94, %s95
    %p99 = pneg %p93
    %p100 = scmp.eq.s32.totalorder %s8, 1
    %p101 = por %p99, %p100
    %p102 = scmp.ne.s32.totalorder %s94, %s97
    %p103 = scmp.eq.s32.totalorder %s8, 0
    %p104 = por %p102, %p103
    %p105 = scmp.ne.s32.totalorder %s94, %s97
    %p106 = scmp.eq.s32.totalorder %s13, 1
    %p107 = por %p105, %p106
    %p108 = scmp.ne.s32.totalorder %s97, %s98
    %p109 = scmp.eq.s32.totalorder %s13, 0
    %p110 = por %p108, %p109
    %p111 = scmp.ne.s32.totalorder %s97, %s98
    %p112 = scmp.eq.s32.totalorder %s14, 1
    %p113 = por %p111, %p112
    %p115 = scmp.ne.s32.totalorder %s98, %s114
    %p116 = scmp.eq.s32.totalorder %s14, 0
    %p117 = por %p115, %p116
    %p118 = scmp.le.s32.totalorder 1, %s8
    %p119 = scmp.lt.s32.totalorder %s8, 3
    %p120 = pnand %p118, %p119
    %p121 = pneg %p120
    // Predicated region
    $region9: #{reghead_forward.1} parent=5 // pred_check
      _
    $region10: #{reghead_forward.1} parent=5 // pred_check_branch
      %123 = sbr.rel (%p120) target = $region12
    $region11: #{reghead_forward.1} parent=5 // pred_region
      %s124 = ssub.s32 %s8, 1
      // Predicated region
      $region13: #{reghead_forward.1} parent=11 // pred_check
        %p125 = pneg %p82
      $region14: #{reghead_forward.1} parent=11 // pred_check_branch
        %127 = sbr.rel (%p125) target = $region16
      $region15: #{reghead_forward.1} parent=11 // pred_region
        _
      $region16: #{reghead_forward.1} parent=11 // pred_fallthru
        _
    $region12: #{reghead_forward.1} parent=5 // pred_fallthru
      _
    %p128 = scmp.lt.s32.totalorder %s8, 2
    // Predicated region
    $region17: #{reghead_forward.1} parent=5 // pred_check
      %p129 = pneg %p128
    $region18: #{reghead_forward.1} parent=5 // pred_check_branch
      %131 = sbr.rel (%p129) target = $region20
    $region19: #{reghead_forward.1} parent=5 // pred_region
      // Predicated region
      $region21: #{reghead_forward.1} parent=19 // pred_check
        %p132 = pneg %p55
      $region22: #{reghead_forward.1} parent=19 // pred_check_branch
        %134 = sbr.rel (%p132) target = $region24
      $region23: #{reghead_forward.1} parent=19 // pred_region
        %s135 = sadd.s32 %s15, %s17
        %p136 = scmp.lt.s32.totalorder %s135, 0
        %s137 = scalar_select %p136, %s135, 0
        %s138 = smul.u32 2, %s137
        %p139 = scmp.lt.s32.totalorder %s16, 1
        %s140 = scalar_select %p139, %s16, 1
        %p141 = scmp.lt.s32.totalorder %s138, 1
        %s142 = scalar_select %p141, %s138, 1
        %s143 = smul.addr %s140, 32
        %s144 = sadd.s32 %s142, %s143
        %s145 = smul.addr %s144, 8
        %s146 = scalar_lea.vmem %s0, %s145
        %s147 = sadd.s32 %s15, %s17
        %p148 = scmp.lt.s32.totalorder %s147, 0
        %s149 = scalar_select %p148, %s147, 0
        %s150 = smul.u32 2, %s149
      $region24: #{reghead_forward.1} parent=19 // pred_fallthru
        _
    $region20: #{reghead_forward.1} parent=5 // pred_fallthru
      _
    %p151 = scmp.le.s32.totalorder 1, %s8
    %p152 = scmp.lt.s32.totalorder %s8, 3
    %p153 = pnand %p151, %p152
    %p154 = pneg %p153
    // Predicated region
    $region25: #{reghead_forward.1} parent=5 // pred_check
      _
    $region26: #{reghead_forward.1} parent=5 // pred_check_branch
      %156 = sbr.rel (%p153) target = $region28
    $region27: #{reghead_forward.1} parent=5 // pred_region
      %s157 = ssub.s32 %s8, 1
      %s158 = sadd.s32 %s18, %s20
      %p159 = scmp.lt.s32.totalorder %s158, 0
      %s160 = scalar_select %p159, %s158, 0
      %s161 = smul.u32 2, %s160
      %p162 = scmp.lt.s32.totalorder %s19, 1
      %s163 = scalar_select %p162, %s19, 1
      %p164 = scmp.lt.s32.totalorder %s161, 1
      %s165 = scalar_select %p164, %s161, 1
      %s166 = smul.addr %s163, 32
      %s167 = sadd.s32 %s165, %s166
      %s168 = smul.addr %s167, 8
      %s169 = scalar_lea.vmem %s0, %s168
      %p170 = pneg %p61
      %p171 = pneg %p58
      %p172 = pneg %p82
      %p173 = pneg %p79
      %p174 = pneg %p110
      %p175 = pneg %p107
      %p176 = scmp.lt.s32.totalorder %s18, 0
      %s177 = scalar_select %p176, %s18, 0
      %p178 = scmp.lt.s32.totalorder %s19, 1
      %s179 = scalar_select %p178, %s19, 1
      %s180 = smul.addr %s177, 2
      %s181 = sadd.s32 %s179, %s180
      %s182 = smul.addr %s181, 8
      %s183 = scalar_lea.vmem %s2, %s182
      %s184 = sadd.s32 %s18, %s20
      %p185 = scmp.lt.s32.totalorder %s184, 0
      %s186 = scalar_select %p185, %s184, 0
      %s187 = smul.u32 2, %s186
      %p188 = scmp.lt.s32.totalorder %s19, 1
      %s189 = scalar_select %p188, %s19, 1
      %p190 = scmp.lt.s32.totalorder %s187, 1
      %s191 = scalar_select %p190, %s187, 1
      %s192 = smul.addr %s189, 32
      %s193 = sadd.s32 %s191, %s192
      %s194 = smul.addr %s193, 8
      %s195 = scalar_lea.vmem %s0, %s194
      %s196 = sadd.s32 %s18, %s20
      %p197 = scmp.lt.s32.totalorder %s196, 0
      %s198 = scalar_select %p197, %s196, 0
      %s199 = smul.u32 2, %s198
      %p200 = scmp.lt.s32.totalorder %s18, 0
      %s201 = scalar_select %p200, %s18, 0
      %p202 = scmp.lt.s32.totalorder %s19, 1
      %s203 = scalar_select %p202, %s19, 1
      %s204 = smul.addr %s201, 2
      %s205 = sadd.s32 %s203, %s204
      %s206 = smul.addr %s205, 8
      %s207 = scalar_lea.vmem %s2, %s206
      %v208 = vld [vmem:[%s1] sm:$0xff]
      %v209 = vld [vmem:[%s195] sm:$0xff]
      %v210 = vld [vmem:[%s195 + $0x8] sm:$0xff]
      %v211 = vld [vmem:[%s195 + $0x10] sm:$0xff]
      %v212 = vld [vmem:[%s195 + $0x18] sm:$0xff]
      %v213 = vld [vmem:[%s195 + $0x20] sm:$0xff]
      %v214 = vld [vmem:[%s195 + $0x28] sm:$0xff]
      %v215 = vld [vmem:[%s195 + $0x30] sm:$0xff]
      %v216 = vld [vmem:[%s195 + $0x38] sm:$0xff]
      %v217 = vld [vmem:[%s195 + $0x40] sm:$0xff]
      %v218 = vld [vmem:[%s195 + $0x48] sm:$0xff]
      %v219 = vld [vmem:[%s195 + $0x50] sm:$0xff]
      %v220 = vld [vmem:[%s195 + $0x58] sm:$0xff]
      %v221 = vld [vmem:[%s195 + $0x60] sm:$0xff]
      %v222 = vld [vmem:[%s195 + $0x68] sm:$0xff]
      %v223 = vld [vmem:[%s195 + $0x70] sm:$0xff]
      %v224 = vld [vmem:[%s195 + $0x78] sm:$0xff]
      %v225 = vld [vmem:[%s195 + $0x80] sm:$0xff]
      %v226 = vld [vmem:[%s195 + $0x88] sm:$0xff]
      %v227 = vld [vmem:[%s195 + $0x90] sm:$0xff]
      %v228 = vld [vmem:[%s195 + $0x98] sm:$0xff]
      %v229 = vld [vmem:[%s195 + $0xa0] sm:$0xff]
      %v230 = vld [vmem:[%s195 + $0xa8] sm:$0xff]
      %v231 = vld [vmem:[%s195 + $0xb0] sm:$0xff]
      %v232 = vld [vmem:[%s195 + $0xb8] sm:$0xff]
      %v233 = vld [vmem:[%s195 + $0xc0] sm:$0xff]
      %v234 = vld [vmem:[%s195 + $0xc8] sm:$0xff]
      %v235 = vld [vmem:[%s195 + $0xd0] sm:$0xff]
      %v236 = vld [vmem:[%s195 + $0xd8] sm:$0xff]
      %v237 = vld [vmem:[%s195 + $0xe0] sm:$0xff]
      %v238 = vld [vmem:[%s195 + $0xe8] sm:$0xff]
      %v239 = vld [vmem:[%s195 + $0xf0] sm:$0xff]
      %v240 = vld [vmem:[%s195 + $0xf8] sm:$0xff]
      %241 = vmatprep.subr.mxu0 %v210
      %242 = vmatpush1.msra.mxu0 %v209
      %243 = vmatprep.subr.mxu0 %v212
      %244 = vmatpush1.msra.mxu0 %v211
      %245 = vmatprep.subr.mxu0 %v214
      %246 = vmatpush1.msra.mxu0 %v213
      %247 = vmatprep.subr.mxu0 %v216
      %248 = vmatpush1.msra.mxu0 %v215
      %249 = vmatprep.subr.mxu0 %v218
      %250 = vmatpush1.msra.mxu0 %v217
      %251 = vmatprep.subr.mxu0 %v220
      %252 = vmatpush1.msra.mxu0 %v219
      %253 = vmatprep.subr.mxu0 %v222
      %254 = vmatpush1.msra.mxu0 %v221
      %255 = vmatprep.subr.mxu0 %v224
      %256 = vmatpush1.msra.mxu0 %v223
      %257 = vmatprep.subr.mxu0 %v226
      %258 = vmatpush1.msra.mxu0 %v225
      %259 = vmatprep.subr.mxu0 %v228
      %260 = vmatpush1.msra.mxu0 %v227
      %261 = vmatprep.subr.mxu0 %v230
      %262 = vmatpush1.msra.mxu0 %v229
      %263 = vmatprep.subr.mxu0 %v232
      %264 = vmatpush1.msra.mxu0 %v231
      %265 = vmatprep.subr.mxu0 %v234
      %266 = vmatpush1.msra.mxu0 %v233
      %267 = vmatprep.subr.mxu0 %v236
      %268 = vmatpush1.msra.mxu0 %v235
      %269 = vmatprep.subr.mxu0 %v238
      %270 = vmatpush1.msra.mxu0 %v237
      %271 = vmatprep.subr.mxu0 %v240
      %272 = vmatpush1.msra.mxu0 %v239
      %273 = vmatprep.subr.mxu0 0.0
      %274 = vmatpush1.msra.mxu0 0.0
      %275 = vmatprep.subr.mxu0 0.0
      %276 = vmatpush1.msra.mxu0 0.0
      %277 = vmatprep.subr.mxu0 0.0
      %278 = vmatpush1.msra.mxu0 0.0
      %279 = vmatprep.subr.mxu0 0.0
      %280 = vmatpush1.msra.mxu0 0.0
      %281 = vmatprep.subr.mxu0 0.0
      %282 = vmatpush1.msra.mxu0 0.0
      %283 = vmatprep.subr.mxu0 0.0
      %284 = vmatpush1.msra.mxu0 0.0
      %285 = vmatprep.subr.mxu0 0.0
      %286 = vmatpush1.msra.mxu0 0.0
      %287 = vmatprep.subr.mxu0 0.0
      %288 = vmatpush1.msra.mxu0 0.0
      %289 = vmatprep.subr.mxu0 0.0
      %290 = vmatpush1.msra.mxu0 0.0
      %291 = vmatprep.subr.mxu0 0.0
      %292 = vmatpush1.msra.mxu0 0.0
      %293 = vmatprep.subr.mxu0 0.0
      %294 = vmatpush1.msra.mxu0 0.0
      %295 = vmatprep.subr.mxu0 0.0
      %296 = vmatpush1.msra.mxu0 0.0
      %297 = vmatprep.subr.mxu0 0.0
      %298 = vmatpush1.msra.mxu0 0.0
      %299 = vmatprep.subr.mxu0 0.0
      %300 = vmatpush1.msra.mxu0 0.0
      %301 = vmatprep.subr.mxu0 0.0
      %302 = vmatpush1.msra.mxu0 0.0
      %303 = vmatprep.subr.mxu0 0.0
      %304 = vmatpush1.msra.mxu0 0.0
      %305 = vmatprep.mubr.f32.mxu0 0.0
      %306 = vmatmul.mubr.f32.gmra.mrb[0].mxu0 %v208
      %v307 = vpop.f32.mrb[0].mxu0
      %v308 = vadd.f32 0.0, %v307
      %v309 = vpop.f32.mrb[0].mxu0
      %v310 = vadd.f32 0.0, %v309
      %311 = vdwg.mxu0
      %v312 = vcombine.high %v308, 0.0
      %v314 = vunpack.c.l.s4 1983009808
      %v315 = vunpack.c.0.s8 %v314
      %v316 = vlaneseq
      %v317 = vshrl.u32 %v316, 7
      %v318 = vsub.s32 %v315, %v317
      %v319 = vrot.slane %v308, %v318
      %v321 = vunpack.c.l.s4 1983009808
      %v322 = vunpack.c.0.s8 %v321
      %v323 = vlaneseq
      %v324 = vshrl.u32 %v323, 7
      %v325 = vsub.s32 %v322, %v324
      %v326 = vrot.slane %v312, %v325
      %v327 = vcombine.high %v310, 0.0
      %v329 = vunpack.c.l.s4 1983009808
      %v330 = vunpack.c.0.s8 %v329
      %v331 = vlaneseq
      %v332 = vshrl.u32 %v331, 7
      %v333 = vsub.s32 %v330, %v332
      %v334 = vrot.slane %v310, %v333
      %v336 = vunpack.c.l.s4 1983009808
      %v337 = vunpack.c.0.s8 %v336
      %v338 = vlaneseq
      %v339 = vshrl.u32 %v338, 7
      %v340 = vsub.s32 %v337, %v339
      %v341 = vrot.slane %v327, %v340
      %v342 = vcombine.low %v319, %v334
      %v343 = vcombine.high %v319, %v334
      %v345 = vunpack.c.l.s4 1934713408
      %v346 = vunpack.c.0.s8 %v345
      %v347 = vlaneseq
      %v348 = vshrl.u32 %v347, 7
      %v349 = vsub.s32 %v346, %v348
      %v350 = vrot.slane %v342, %v349
      %v352 = vunpack.c.l.s4 1934713408
      %v353 = vunpack.c.0.s8 %v352
      %v354 = vlaneseq
      %v355 = vshrl.u32 %v354, 7
      %v356 = vsub.s32 %v353, %v355
      %v357 = vrot.slane %v343, %v356
      %v358 = vcombine.low %v326, %v341
      %v359 = vcombine.high %v326, %v341
      %v361 = vunpack.c.l.s4 1934713408
      %v362 = vunpack.c.0.s8 %v361
      %v363 = vlaneseq
      %v364 = vshrl.u32 %v363, 7
      %v365 = vsub.s32 %v362, %v364
      %v366 = vrot.slane %v358, %v365
      %v368 = vunpack.c.l.s4 1934713408
      %v369 = vunpack.c.0.s8 %v368
      %v370 = vlaneseq
      %v371 = vshrl.u32 %v370, 7
      %v372 = vsub.s32 %v369, %v371
      %v373 = vrot.slane %v359, %v372
      %v374 = vcombine.high %v350, 0.0
      %v375 = vcombine.high %v357, 0.0
      %v376 = vcombine.high %v366, 0.0
      %v377 = vcombine.high %v373, 0.0
      %vm378 = vcmask 1041408
      %v379 = vsel %vm378, %v350, -inf
      %v380 = vrot.slane %v379, 4
      %v381 = vmax.f32 %v379, %v380
      %v382 = vrot.slane %v381, 2
      %v383 = vmax.f32 %v381, %v382
      %v384 = vrot.slane %v383, 1
      %v385 = vmax.f32 %v383, %v384
      %v386 = vsel %vm378, %v374, -inf
      %v387 = vrot.slane %v386, 4
      %v388 = vmax.f32 %v386, %v387
      %v389 = vrot.slane %v388, 2
      %v390 = vmax.f32 %v388, %v389
      %v391 = vrot.slane %v390, 1
      %v392 = vmax.f32 %v390, %v391
      %v393 = vsel %vm378, %v357, -inf
      %v394 = vrot.slane %v393, 4
      %v395 = vmax.f32 %v393, %v394
      %v396 = vrot.slane %v395, 2
      %v397 = vmax.f32 %v395, %v396
      %v398 = vrot.slane %v397, 1
      %v399 = vmax.f32 %v397, %v398
      %v400 = vsel %vm378, %v375, -inf
      %v401 = vrot.slane %v400, 4
      %v402 = vmax.f32 %v400, %v401
      %v403 = vrot.slane %v402, 2
      %v404 = vmax.f32 %v402, %v403
      %v405 = vrot.slane %v404, 1
      %v406 = vmax.f32 %v404, %v405
      %v407 = vsel %vm378, %v366, -inf
      %v408 = vrot.slane %v407, 4
      %v409 = vmax.f32 %v407, %v408
      %v410 = vrot.slane %v409, 2
      %v411 = vmax.f32 %v409, %v410
      %v412 = vrot.slane %v411, 1
      %v413 = vmax.f32 %v411, %v412
      %v414 = vsel %vm378, %v376, -inf
      %v415 = vrot.slane %v414, 4
      %v416 = vmax.f32 %v414, %v415
      %v417 = vrot.slane %v416, 2
      %v418 = vmax.f32 %v416, %v417
      %v419 = vrot.slane %v418, 1
      %v420 = vmax.f32 %v418, %v419
      %v421 = vsel %vm378, %v373, -inf
      %v422 = vrot.slane %v421, 4
      %v423 = vmax.f32 %v421, %v422
      %v424 = vrot.slane %v423, 2
      %v425 = vmax.f32 %v423, %v424
      %v426 = vrot.slane %v425, 1
      %v427 = vmax.f32 %v425, %v426
      %v428 = vsel %vm378, %v377, -inf
      %v429 = vrot.slane %v428, 4
      %v430 = vmax.f32 %v428, %v429
      %v431 = vrot.slane %v430, 2
      %v432 = vmax.f32 %v430, %v431
      %v433 = vrot.slane %v432, 1
      %v434 = vmax.f32 %v432, %v433
      %p435 = scmp.eq.s32.totalorder %s20, 0
      // Predicated region
      $region29: #{reghead_forward.1} parent=27 // pred_check
        %p436 = pneg %p435
      $region30: #{reghead_forward.1} parent=27 // pred_check_branch
        %438 = sbr.rel (%p436) target = $region32
      $region31: #{reghead_forward.1} parent=27 // pred_region
        %vm447 = vcmask 1041409
        %v448 = vsel %vm447, %v392, %v385
        %vm449 = vcmask 1042434
        %v450 = vsel %vm449, %v399, %v448
        %vm451 = vcmask 1043459
        %v452 = vsel %vm451, %v406, %v450
        %vm453 = vcmask 1044484
        %v454 = vsel %vm453, %v413, %v452
        %vm455 = vcmask 1045509
        %v456 = vsel %vm455, %v420, %v454
        %vm457 = vcmask 1046534
        %v458 = vsel %vm457, %v427, %v456
        %vm459 = vcmask 1047559
        %v460 = vsel %vm459, %v434, %v458
        %462 = vst [vmem:[#allocation2] sm:$0xff] %v460
      $region32: #{reghead_forward.1} parent=27 // pred_fallthru
        _
      %p463 = scmp.ne.s32.totalorder %s20, 0
      // Predicated region
      $region33: #{reghead_forward.1} parent=27 // pred_check
        %p464 = pneg %p463
      $region34: #{reghead_forward.1} parent=27 // pred_check_branch
        %466 = sbr.rel (%p464) target = $region36
      $region35: #{reghead_forward.1} parent=27 // pred_region
        %v467 = vld [vmem:[#allocation2] sm:$0xff]
        %vm476 = vcmask 1041409
        %v477 = vsel %vm476, %v392, %v385
        %vm478 = vcmask 1042434
        %v479 = vsel %vm478, %v399, %v477
        %vm480 = vcmask 1043459
        %v481 = vsel %vm480, %v406, %v479
        %vm482 = vcmask 1044484
        %v483 = vsel %vm482, %v413, %v481
        %vm484 = vcmask 1045509
        %v485 = vsel %vm484, %v420, %v483
        %vm486 = vcmask 1046534
        %v487 = vsel %vm486, %v427, %v485
        %vm488 = vcmask 1047559
        %v489 = vsel %vm488, %v434, %v487
        %v491 = vmax.f32 %v467, %v489
        %492 = vst [vmem:[#allocation2] sm:$0xff] %v491
      $region36: #{reghead_forward.1} parent=27 // pred_fallthru
        _
      // Predicated region
      $region37: #{reghead_forward.1} parent=27 // pred_check
        %p493 = pneg %p435
      $region38: #{reghead_forward.1} parent=27 // pred_check_branch
        %495 = sbr.rel (%p493) target = $region40
      $region39: #{reghead_forward.1} parent=27 // pred_region
        %v496 = vld [vmem:[#allocation2] sm:$0xff]
        %497 = vmax.xlane.f32.xlu0 %v496
        %v498 = vpop.xlane.xlu0 %497
        %vm499 = vcmask 7168
        %500 = vst.msk [vmem:[%s207] sm:$0xff] %vm499, %v498
      $region40: #{reghead_forward.1} parent=27 // pred_fallthru
        _
      %p501 = scmp.lt.s32.totalorder %s18, 0
      %s502 = scalar_select %p501, %s18, 0
      %p503 = scmp.lt.s32.totalorder %s19, 1
      %s504 = scalar_select %p503, %s19, 1
      %s505 = smul.addr %s502, 2
      %s506 = sadd.s32 %s504, %s505
      %s507 = smul.addr %s506, 8
      %s508 = scalar_lea.vmem %s2, %s507
      // Predicated region
      $region41: #{reghead_forward.1} parent=27 // pred_check
        %p509 = pneg %p107
      $region42: #{reghead_forward.1} parent=27 // pred_check_branch
        %511 = sbr.rel (%p509) target = $region44
      $region43: #{reghead_forward.1} parent=27 // pred_region
        _
      $region44: #{reghead_forward.1} parent=27 // pred_fallthru
        _
    $region28: #{reghead_forward.1} parent=5 // pred_fallthru
      _
    %p512 = scmp.le.s32.totalorder 2, %s8
    // Predicated region
    $region45: #{reghead_forward.1} parent=5 // pred_check
      %p513 = pneg %p512
    $region46: #{reghead_forward.1} parent=5 // pred_check_branch
      %515 = sbr.rel (%p513) target = $region48
    $region47: #{reghead_forward.1} parent=5 // pred_region
      %s516 = ssub.s32 %s8, 2
      // Predicated region
      $region49: #{reghead_forward.1} parent=47 // pred_check
        %p517 = pneg %p113
      $region50: #{reghead_forward.1} parent=47 // pred_check_branch
        %519 = sbr.rel (%p517) target = $region52
      $region51: #{reghead_forward.1} parent=47 // pred_region
        %p520 = scmp.lt.s32.totalorder %s21, 0
        %s521 = scalar_select %p520, %s21, 0
        %p522 = scmp.lt.s32.totalorder %s22, 1
        %s523 = scalar_select %p522, %s22, 1
        %s524 = smul.addr %s521, 2
        %s525 = sadd.s32 %s523, %s524
        %s526 = smul.addr %s525, 8
        %s527 = scalar_lea.vmem %s2, %s526
      $region52: #{reghead_forward.1} parent=47 // pred_fallthru
        _
    $region48: #{reghead_forward.1} parent=5 // pred_fallthru
      _
  $region6: #{reghead_forward.1} parent=0 // loop_footer
    %s12 = sadd.s32 1, %s8
  $region7: #{reghead_forward.1} parent=0 // loop_footer_branch
    %7 = sbr.rel target = $region3
  $region8: #{reghead_forward.1} parent=0 // loop_exit
    _

</llo_original>
